<compile_context>
chip_gen: v7x
topology: tpu7x:2x2x1
jax: 0.10.0
libtpu: 0.0.40
codegen_flags: <defaults>
</compile_context>

<pallas_src>
import functools

import numpy as np
import jax
import jax.numpy as jnp
from jax import lax
from jax.experimental import pallas as pl
from jax.experimental.pallas import tpu as pltpu

# ---- cfg constants (cfg.variables.*, cfg.slope.*, cfg.length.idx) ----
P_SPATIAL = 21.0      # cfg.variables.p
T_DT = 3600.0         # cfg.variables.t  (routing timestep, s)
X_STORAGE = 0.2       # cfg.variables.x
SLOPE_MIN = 1e-4      # cfg.slope.min
SLOPE_MAX = 0.3       # cfg.slope.max
LENGTH_IDX = 0        # cfg.length.idx
SLOPE_IDX = 1         # cfg.slope.idx
Q_MIN = 1e-4          # clamp on routed discharge
V_MIN, V_MAX = 0.3, 15.0

N_PAD = 128
G_PAD = 128
TB_DEFAULT = 256      # timesteps per grid step (multiple of 8, VMEM-cheap)


def _mc_kernel(qp_ref, wT_ref, g_ref, lvl_ref, pre_ref, out_ref,
               dt_ref, dblk_ref, *, num_levels, tb):
    b = pl.program_id(0)

    # Hoist all block-invariant loads once per grid step.
    W = wT_ref[...]                      # (N_PAD, N_PAD) adjacency (transposed)
    lvl = lvl_ref[...]                   # (L, N_PAD) topological level masks
    pre = pre_ref[...]                   # (4, N_PAD) precomputed reach rows
    coef_a = pre[0:1, :]                 # n*(qs+1) / (P*sqrt(s0))
    expo = pre[1:2, :]                   # 2 / (5 + 3*qs)
    coef_b = pre[2:3, :]                 # sqrt(s0) / n
    length = pre[3:4, :]

    def step(i, d_t):
        qp = qp_ref[pl.ds(i, 1), :]      # lateral inflow at this timestep

        # ---- velocity: v = (sqrt(s0)/n) * (q_t*n*(qs+1)/(P*sqrt(s0)))^(2/(5+3qs))
        v = coef_b * jnp.power(d_t * coef_a, expo)
        c = jnp.clip(v, V_MIN, V_MAX) * (5.0 / 3.0)

        # ---- Muskingum-Cunge coefficients ----
        k = length / c
        two_kx = (2.0 * X_STORAGE) * k
        two_k1mx = (2.0 * (1.0 - X_STORAGE)) * k
        inv_denom = 1.0 / (two_k1mx + T_DT)
        c1 = (T_DT - two_kx) * inv_denom
        c2 = (T_DT + two_kx) * inv_denom
        c3 = (two_k1mx - T_DT) * inv_denom
        c4 = (2.0 * T_DT) * inv_denom

        # inflow at time t (upstream gather == matmul with 0/1 adjacency)
        i_t = jnp.dot(d_t, W, preferred_element_type=jnp.float32)
        base = c2 * i_t + c3 * d_t + c4 * qp       # level-invariant part

        # level 0: no upstream nodes => i_t1 == 0, skip the matmul entirely
        d_t1 = lvl[0:1, :] * jnp.maximum(base, Q_MIN)
        # sweep the remaining topological levels: level j reads discharge_t1 of
        # upstream reaches already updated at levels < j within this timestep.
        for j in range(1, num_levels):
            i_t1 = jnp.dot(d_t1, W, preferred_element_type=jnp.float32)
            q_t1 = jnp.maximum(c1 * i_t1 + base, Q_MIN)
            d_t1 = d_t1 + lvl[j:j + 1, :] * q_t1   # levels are disjoint

        dblk_ref[pl.ds(i, 1), :] = d_t1            # block discharge history
        return d_t1

    @pl.when(b == 0)
    def _first_block():
        d0 = qp_ref[pl.ds(0, 1), :]                # _discharge_t = q_prime[0]
        dblk_ref[pl.ds(0, 1), :] = d0
        dt_ref[...] = lax.fori_loop(1, tb, step, d0)

    @pl.when(b > 0)
    def _later_blocks():
        dt_ref[...] = lax.fori_loop(0, tb, step, dt_ref[...])

    # One well-shaped (TB,128)x(128,G_PAD) gage readout per block instead of
    # TB tiny M=1 matmuls.
    out_ref[...] = jnp.dot(dblk_ref[...], g_ref[...],
                           preferred_element_type=jnp.float32)


def explicit_mc_forward(q_prime, attributes, w_up, gage_mat, level_masks,
                        n_vec, q_spatial_vec, *, num_gages, tb=TB_DEFAULT):
    """q_prime: (T, N); attributes: (N, A); w_up: (N, N) 0/1 with w_up[i,u]=1
    iff reach u is directly upstream of reach i; gage_mat: (num_gages, N);
    level_masks: (L, N) 0/1 per topological level.  Returns [num_gages, T]."""
    T, N = q_prime.shape
    L = level_masks.shape[0]

    # Time-block size: multiple of 8 (sublane tiling), no larger than needed.
    tb = int(min(tb, -(-T // 8) * 8))
    tb = max(8, (tb // 8) * 8)
    num_blocks = -(-T // tb)
    t_pad = num_blocks * tb

    length = attributes[:, LENGTH_IDX].astype(jnp.float32)
    slope = jnp.clip(attributes[:, SLOPE_IDX].astype(jnp.float32),
                     SLOPE_MIN, SLOPE_MAX)
    n = n_vec.astype(jnp.float32)
    qs = q_spatial_vec.astype(jnp.float32)

    # Timestep-invariant velocity factors (computed once on host/XLA):
    sqrt_s0 = jnp.sqrt(slope)
    coef_a = n * (qs + 1.0) / (P_SPATIAL * sqrt_s0)
    expo = 2.0 / (5.0 + 3.0 * qs)
    coef_b = sqrt_s0 / n

    pre = jnp.zeros((4, N_PAD), jnp.float32)
    pre = pre.at[0, :N].set(coef_a).at[1, :N].set(expo)
    pre = pre.at[2, :N].set(coef_b).at[3, :N].set(length)
    # padded lanes: harmless positive values (never reach real outputs)
    pre = pre.at[0, N:].set(1.0).at[1, N:].set(0.5)
    pre = pre.at[2, N:].set(1.0).at[3, N:].set(1000.0)

    qp_p = jnp.zeros((t_pad, N_PAD), jnp.float32).at[:T, :N].set(
        q_prime.astype(jnp.float32))
    wT_p = jnp.zeros((N_PAD, N_PAD), jnp.float32).at[:N, :N].set(
        w_up.T.astype(jnp.float32))
    g_p = jnp.zeros((N_PAD, G_PAD), jnp.float32).at[:N, :num_gages].set(
        gage_mat.T.astype(jnp.float32))
    lvl_p = jnp.zeros((L, N_PAD), jnp.float32).at[:, :N].set(
        level_masks.astype(jnp.float32))

    kernel = functools.partial(_mc_kernel, num_levels=L, tb=tb)
    out = pl.pallas_call(
        kernel,
        out_shape=jax.ShapeDtypeStruct((t_pad, G_PAD), jnp.float32),
        grid=(num_blocks,),
        in_specs=[
            pl.BlockSpec((tb, N_PAD), lambda b: (b, 0)),       # q_prime block
            pl.BlockSpec((N_PAD, N_PAD), lambda b: (0, 0)),    # W^T
            pl.BlockSpec((N_PAD, G_PAD), lambda b: (0, 0)),    # gage matrix
            pl.BlockSpec((L, N_PAD), lambda b: (0, 0)),        # level masks
            pl.BlockSpec((4, N_PAD), lambda b: (0, 0)),        # precomputed rows
        ],
        out_specs=pl.BlockSpec((tb, G_PAD), lambda b: (b, 0)),
        scratch_shapes=[pltpu.VMEM((1, N_PAD), jnp.float32),   # discharge carry
                        pltpu.VMEM((tb, N_PAD), jnp.float32)], # block history
        compiler_params=pltpu.CompilerParams(
            # The time-block axis carries state in scratch across grid steps —
            # it must stay sequential ("arbitrary"), never "parallel".
            dimension_semantics=("arbitrary",)),
    )(qp_p, wT_p, g_p, lvl_p, pre)

    return out[:T, :num_gages].T   # [num_gages, T] — matches torch output


def reference_forward(q_prime, attributes, w_up, gage_mat, level_masks,
                      n_vec, qs_vec):
    q_prime = np.asarray(q_prime, np.float64)
    T, N = q_prime.shape
    length = np.asarray(attributes[:, LENGTH_IDX], np.float64)
    s0 = np.clip(np.asarray(attributes[:, SLOPE_IDX], np.float64),
                 SLOPE_MIN, SLOPE_MAX)
    n = np.asarray(n_vec, np.float64)
    qs = np.asarray(qs_vec, np.float64)
    W = np.asarray(w_up, np.float64)
    G = np.asarray(gage_mat, np.float64)
    L = level_masks.shape[0]
    out = np.zeros((G.shape[0], T), np.float64)
    d_t = q_prime[0].copy()
    out[:, 0] = G @ d_t
    for t in range(1, T):
        q_t = d_t
        numerator = q_t * n * (qs + 1.0)
        denominator = P_SPATIAL * np.sqrt(s0)
        depth = np.power(numerator / denominator, 3.0 / (5.0 + 3.0 * qs))
        v = (1.0 / n) * np.power(depth, 2.0 / 3.0) * np.sqrt(s0)
        c = np.clip(v, V_MIN, V_MAX) * (5.0 / 3.0)
        k = length / c
        denom = 2.0 * k * (1.0 - X_STORAGE) + T_DT
        c1 = (T_DT - 2.0 * k * X_STORAGE) / denom
        c2 = (T_DT + 2.0 * k * X_STORAGE) / denom
        c3 = (2.0 * k * (1.0 - X_STORAGE) - T_DT) / denom
        c4 = 2.0 * T_DT / denom
        i_t = W @ d_t
        d_t1 = np.zeros(N, np.float64)
        for j in range(L):
            i_t1 = W @ d_t1
            q_t1 = np.maximum(c1 * i_t1 + c2 * i_t + c3 * q_t
                              + c4 * q_prime[t], Q_MIN)
            d_t1 = np.where(level_masks[j] > 0, q_t1, d_t1)
        out[:, t] = G @ d_t1
        d_t = d_t1
    return out


if __name__ == "__main__":
    key = jax.random.PRNGKey(0)
    N, T, num_gages = 8, 8, 2

    k1, k2, k3, k4 = jax.random.split(key, 4)
    q_prime = jax.random.uniform(k1, (T, N), jnp.float32, 0.5, 5.0)
    length = jax.random.uniform(k2, (N,), jnp.float32, 1000.0, 5000.0)
    slope = jax.random.uniform(k3, (N,), jnp.float32, 1e-4, 0.05)
    extra = jax.random.uniform(k4, (N,), jnp.float32)
    attributes = jnp.stack([length, slope, extra], axis=1)     # (N, 3)

    # deterministic stand-ins for neural_network.n / neural_network.q
    reach_ids = jnp.arange(N, dtype=jnp.float32)
    n_vec = 0.02 + 0.002 * reach_ids                            # Manning's n
    qs_vec = 0.3 + 0.05 * reach_ids                             # spatial q exponent

    # synthetic river network: 4 headwaters -> 2 confluences -> 1 -> outlet
    w_up = np.zeros((N, N), np.float32)
    w_up[4, 0] = w_up[4, 1] = 1.0
    w_up[5, 2] = w_up[5, 3] = 1.0
    w_up[6, 4] = w_up[6, 5] = 1.0
    w_up[7, 6] = 1.0
    level_masks = np.zeros((4, N), np.float32)
    level_masks[0, [0, 1, 2, 3]] = 1.0
    level_masks[1, [4, 5]] = 1.0
    level_masks[2, [6]] = 1.0
    level_masks[3, [7]] = 1.0
    gage_mat = np.zeros((num_gages, N), np.float32)
    gage_mat[0, 7] = 1.0
    gage_mat[1, 4] = 1.0
    gage_mat[1, 6] = 1.0

    out = explicit_mc_forward(q_prime, attributes, jnp.asarray(w_up),
                              jnp.asarray(gage_mat), jnp.asarray(level_masks),
                              n_vec, qs_vec, num_gages=num_gages)
    out = jax.block_until_ready(out)

    ref = reference_forward(np.asarray(q_prime), np.asarray(attributes), w_up,
                            gage_mat, level_masks, np.asarray(n_vec),
                            np.asarray(qs_vec))
    np.testing.assert_allclose(np.asarray(out, np.float64), ref,
                               rtol=2e-2, atol=1e-3)
    print("KERNEL_OK")
</pallas_src>

<mosaic_0001>
module attributes {stable_mosaic.version = 11 : i64} {
  func.func @_mc_kernel(%arg0: i32, %arg1: memref<8x128xf32, #tpu.memory_space<vmem>>, %arg2: memref<128x128xf32, #tpu.memory_space<vmem>>, %arg3: memref<128x128xf32, #tpu.memory_space<vmem>>, %arg4: memref<4x128xf32, #tpu.memory_space<vmem>>, %arg5: memref<4x128xf32, #tpu.memory_space<vmem>>, %arg6: memref<8x128xf32, #tpu.memory_space<vmem>>, %arg7: memref<1x128xf32, #tpu.memory_space<vmem>>, %arg8: memref<8x128xf32, #tpu.memory_space<vmem>>) attributes {dimension_semantics = [#tpu.dimension_semantics<arbitrary>], iteration_bounds = array<i64: 1>, scalar_prefetch = 0 : i64, scratch_operands = 2 : i64, tpu.core_type = #tpu.core_type<tc>, window_params = [{transform_indices = @transform_0, window_bounds = array<i64: 8, 128>}, {pipeline_mode = #tpu.pipeline_mode<synchronous>, transform_indices = @transform_1, window_bounds = array<i64: 128, 128>}, {pipeline_mode = #tpu.pipeline_mode<synchronous>, transform_indices = @transform_2, window_bounds = array<i64: 128, 128>}, {pipeline_mode = #tpu.pipeline_mode<synchronous>, transform_indices = @transform_3, window_bounds = array<i64: 4, 128>}, {pipeline_mode = #tpu.pipeline_mode<synchronous>, transform_indices = @transform_4, window_bounds = array<i64: 4, 128>}, {transform_indices = @transform_5, window_bounds = array<i64: 8, 128>}]} {
    %c0 = arith.constant 0 : index
    %c0_0 = arith.constant 0 : index
    %0 = vector.load %arg2[%c0, %c0_0] : memref<128x128xf32, #tpu.memory_space<vmem>>, vector<128x128xf32>
    %c0_1 = arith.constant 0 : index
    %c0_2 = arith.constant 0 : index
    %1 = vector.load %arg4[%c0_1, %c0_2] : memref<4x128xf32, #tpu.memory_space<vmem>>, vector<4x128xf32>
    %c0_3 = arith.constant 0 : index
    %c0_4 = arith.constant 0 : index
    %2 = vector.load %arg5[%c0_3, %c0_4] : memref<4x128xf32, #tpu.memory_space<vmem>>, vector<4x128xf32>
    %3 = vector.extract_strided_slice %2 {offsets = [0, 0], sizes = [1, 128], strides = [1, 1]} : vector<4x128xf32> to vector<1x128xf32>
    %4 = vector.extract_strided_slice %2 {offsets = [1, 0], sizes = [1, 128], strides = [1, 1]} : vector<4x128xf32> to vector<1x128xf32>
    %5 = vector.extract_strided_slice %2 {offsets = [2, 0], sizes = [1, 128], strides = [1, 1]} : vector<4x128xf32> to vector<1x128xf32>
    %6 = vector.extract_strided_slice %2 {offsets = [3, 0], sizes = [1, 128], strides = [1, 1]} : vector<4x128xf32> to vector<1x128xf32>
    %c0_i32 = arith.constant 0 : i32
    %7 = arith.cmpi eq, %arg0, %c0_i32 : i32
    %8 = arith.extui %7 : i1 to i32
    %c0_i32_5 = arith.constant 0 : i32
    %9 = arith.cmpi ne, %8, %c0_i32_5 : i32
    scf.if %9 {
      %c0_14 = arith.constant 0 : index
      %c0_15 = arith.constant 0 : index
      %17 = vector.load %arg1[%c0_14, %c0_15] : memref<8x128xf32, #tpu.memory_space<vmem>>, vector<1x128xf32>
      %c0_16 = arith.constant 0 : index
      %c0_17 = arith.constant 0 : index
      %18 = vector.load %arg8[%c0_16, %c0_17] : memref<8x128xf32, #tpu.memory_space<vmem>>, vector<1x128xf32>
      tpu.vector_store %arg8[%c0_16, %c0_17], %17 {strides = array<i32>} : memref<8x128xf32, #tpu.memory_space<vmem>>, vector<1x128xf32>,
      %c1_i32 = arith.constant 1 : i32
      %c7_i32 = arith.constant 7 : i32
      %19 = arith.addi %c1_i32, %c7_i32 : i32
      %c1_i32_18 = arith.constant 1 : i32
      %20 = scf.for %arg9 = %c1_i32 to %19 step %c1_i32_18 iter_args(%arg10 = %17) -> (vector<1x128xf32>)  : i32 {
        %22 = arith.index_cast %arg9 : i32 to index
        %c0_22 = arith.constant 0 : index
        %23 = vector.load %arg1[%22, %c0_22] : memref<8x128xf32, #tpu.memory_space<vmem>>, vector<1x128xf32>
        %24 = arith.mulf %arg10, %3 : vector<1x128xf32>
        %25 = math.powf %24, %4 : vector<1x128xf32>
        %26 = arith.mulf %5, %25 : vector<1x128xf32>
        %cst_23 = arith.constant 3.000000e-01 : f32
        %cst_24 = arith.constant 1.500000e+01 : f32
        %27 = vector.broadcast %cst_23 : f32 to vector<1x128xf32>
        %28 = arith.maximumf %27, %26 : vector<1x128xf32>
        %29 = vector.broadcast %cst_24 : f32 to vector<1x128xf32>
        %30 = arith.minimumf %29, %28 : vector<1x128xf32>
        %cst_25 = arith.constant 1.66666663 : f32
        %31 = vector.broadcast %cst_25 : f32 to vector<1x128xf32>
        %32 = arith.mulf %30, %31 : vector<1x128xf32>
        %33 = arith.divf %6, %32 : vector<1x128xf32>
        %cst_26 = arith.constant 4.000000e-01 : f32
        %34 = vector.broadcast %cst_26 : f32 to vector<1x128xf32>
        %35 = arith.mulf %34, %33 : vector<1x128xf32>
        %cst_27 = arith.constant 1.600000e+00 : f32
        %36 = vector.broadcast %cst_27 : f32 to vector<1x128xf32>
        %37 = arith.mulf %36, %33 : vector<1x128xf32>
        %cst_28 = arith.constant 3.600000e+03 : f32
        %38 = vector.broadcast %cst_28 : f32 to vector<1x128xf32>
        %39 = arith.addf %37, %38 : vector<1x128xf32>
        %cst_29 = arith.constant 1.000000e+00 : f32
        %40 = vector.broadcast %cst_29 : f32 to vector<1x128xf32>
        %41 = arith.divf %40, %39 : vector<1x128xf32>
        %cst_30 = arith.constant 3.600000e+03 : f32
        %42 = vector.broadcast %cst_30 : f32 to vector<1x128xf32>
        %43 = arith.subf %42, %35 : vector<1x128xf32>
        %44 = arith.mulf %43, %41 : vector<1x128xf32>
        %cst_31 = arith.constant 3.600000e+03 : f32
        %45 = vector.broadcast %cst_31 : f32 to vector<1x128xf32>
        %46 = arith.addf %45, %35 : vector<1x128xf32>
        %47 = arith.mulf %46, %41 : vector<1x128xf32>
        %cst_32 = arith.constant 3.600000e+03 : f32
        %48 = vector.broadcast %cst_32 : f32 to vector<1x128xf32>
        %49 = arith.subf %37, %48 : vector<1x128xf32>
        %50 = arith.mulf %49, %41 : vector<1x128xf32>
        %cst_33 = arith.constant 7.200000e+03 : f32
        %51 = vector.broadcast %cst_33 : f32 to vector<1x128xf32>
        %52 = arith.mulf %51, %41 : vector<1x128xf32>
        %cst_34 = arith.constant dense<0.000000e+00> : vector<1x128xf32>
        %53 = tpu.matmul %arg10, %0, %cst_34 {dimension_numbers = #tpu.dot_dimension_numbers<[1], [0], [0], [1], [0, 0, 1, 1], [], []>} : vector<1x128xf32>, vector<128x128xf32>, vector<1x128xf32> -> vector<1x128xf32>
        %54 = arith.mulf %47, %53 : vector<1x128xf32>
        %55 = arith.mulf %50, %arg10 : vector<1x128xf32>
        %56 = arith.addf %54, %55 : vector<1x128xf32>
        %57 = arith.mulf %52, %23 : vector<1x128xf32>
        %58 = arith.addf %56, %57 : vector<1x128xf32>
        %59 = vector.extract_strided_slice %1 {offsets = [0, 0], sizes = [1, 128], strides = [1, 1]} : vector<4x128xf32> to vector<1x128xf32>
        %cst_35 = arith.constant 9.99999974E-5 : f32
        %60 = vector.broadcast %cst_35 : f32 to vector<1x128xf32>
        %61 = arith.maximumf %58, %60 : vector<1x128xf32>
        %62 = arith.mulf %59, %61 : vector<1x128xf32>
        %cst_36 = arith.constant dense<0.000000e+00> : vector<1x128xf32>
        %63 = tpu.matmul %62, %0, %cst_36 {dimension_numbers = #tpu.dot_dimension_numbers<[1], [0], [0], [1], [0, 0, 1, 1], [], []>} : vector<1x128xf32>, vector<128x128xf32>, vector<1x128xf32> -> vector<1x128xf32>
        %64 = arith.mulf %44, %63 : vector<1x128xf32>
        %65 = arith.addf %64, %58 : vector<1x128xf32>
        %cst_37 = arith.constant 9.99999974E-5 : f32
        %66 = vector.broadcast %cst_37 : f32 to vector<1x128xf32>
        %67 = arith.maximumf %65, %66 : vector<1x128xf32>
        %68 = vector.extract_strided_slice %1 {offsets = [1, 0], sizes = [1, 128], strides = [1, 1]} : vector<4x128xf32> to vector<1x128xf32>
        %69 = arith.mulf %68, %67 : vector<1x128xf32>
        %70 = arith.addf %62, %69 : vector<1x128xf32>
        %cst_38 = arith.constant dense<0.000000e+00> : vector<1x128xf32>
        %71 = tpu.matmul %70, %0, %cst_38 {dimension_numbers = #tpu.dot_dimension_numbers<[1], [0], [0], [1], [0, 0, 1, 1], [], []>} : vector<1x128xf32>, vector<128x128xf32>, vector<1x128xf32> -> vector<1x128xf32>
        %72 = arith.mulf %44, %71 : vector<1x128xf32>
        %73 = arith.addf %72, %58 : vector<1x128xf32>
        %cst_39 = arith.constant 9.99999974E-5 : f32
        %74 = vector.broadcast %cst_39 : f32 to vector<1x128xf32>
        %75 = arith.maximumf %73, %74 : vector<1x128xf32>
        %76 = vector.extract_strided_slice %1 {offsets = [2, 0], sizes = [1, 128], strides = [1, 1]} : vector<4x128xf32> to vector<1x128xf32>
        %77 = arith.mulf %76, %75 : vector<1x128xf32>
        %78 = arith.addf %70, %77 : vector<1x128xf32>
        %cst_40 = arith.constant dense<0.000000e+00> : vector<1x128xf32>
        %79 = tpu.matmul %78, %0, %cst_40 {dimension_numbers = #tpu.dot_dimension_numbers<[1], [0], [0], [1], [0, 0, 1, 1], [], []>} : vector<1x128xf32>, vector<128x128xf32>, vector<1x128xf32> -> vector<1x128xf32>
        %80 = arith.mulf %44, %79 : vector<1x128xf32>
        %81 = arith.addf %80, %58 : vector<1x128xf32>
        %cst_41 = arith.constant 9.99999974E-5 : f32
        %82 = vector.broadcast %cst_41 : f32 to vector<1x128xf32>
        %83 = arith.maximumf %81, %82 : vector<1x128xf32>
        %84 = vector.extract_strided_slice %1 {offsets = [3, 0], sizes = [1, 128], strides = [1, 1]} : vector<4x128xf32> to vector<1x128xf32>
        %85 = arith.mulf %84, %83 : vector<1x128xf32>
        %86 = arith.addf %78, %85 : vector<1x128xf32>
        %87 = arith.index_cast %arg9 : i32 to index
        %c0_42 = arith.constant 0 : index
        %88 = vector.load %arg8[%87, %c0_42] : memref<8x128xf32, #tpu.memory_space<vmem>>, vector<1x128xf32>
        tpu.vector_store %arg8[%87, %c0_42], %86 {strides = array<i32>} : memref<8x128xf32, #tpu.memory_space<vmem>>, vector<1x128xf32>,
        scf.yield %86 : vector<1x128xf32>
      }
      %c7_i32_19 = arith.constant 7 : i32
      %c0_20 = arith.constant 0 : index
      %c0_21 = arith.constant 0 : index
      %21 = vector.load %arg7[%c0_20, %c0_21] : memref<1x128xf32, #tpu.memory_space<vmem>>, vector<1x128xf32>
      tpu.vector_store %arg7[%c0_20, %c0_21], %20 {strides = array<i32>} : memref<1x128xf32, #tpu.memory_space<vmem>>, vector<1x128xf32>,
    } else {
    }
    %c0_i32_6 = arith.constant 0 : i32
    %10 = arith.cmpi sgt, %arg0, %c0_i32_6 : i32
    %11 = arith.extui %10 : i1 to i32
    %c0_i32_7 = arith.constant 0 : i32
    %12 = arith.cmpi ne, %11, %c0_i32_7 : i32
    scf.if %12 {
      %c0_14 = arith.constant 0 : index
      %c0_15 = arith.constant 0 : index
      %17 = vector.load %arg7[%c0_14, %c0_15] : memref<1x128xf32, #tpu.memory_space<vmem>>, vector<1x128xf32>
      %c0_i32_16 = arith.constant 0 : i32
      %c8_i32 = arith.constant 8 : i32
      %18 = arith.addi %c0_i32_16, %c8_i32 : i32
      %c1_i32 = arith.constant 1 : i32
      %19 = scf.for %arg9 = %c0_i32_16 to %18 step %c1_i32 iter_args(%arg10 = %17) -> (vector<1x128xf32>)  : i32 {
        %21 = arith.index_cast %arg9 : i32 to index
        %c0_20 = arith.constant 0 : index
        %22 = vector.load %arg1[%21, %c0_20] : memref<8x128xf32, #tpu.memory_space<vmem>>, vector<1x128xf32>
        %23 = arith.mulf %arg10, %3 : vector<1x128xf32>
        %24 = math.powf %23, %4 : vector<1x128xf32>
        %25 = arith.mulf %5, %24 : vector<1x128xf32>
        %cst_21 = arith.constant 3.000000e-01 : f32
        %cst_22 = arith.constant 1.500000e+01 : f32
        %26 = vector.broadcast %cst_21 : f32 to vector<1x128xf32>
        %27 = arith.maximumf %26, %25 : vector<1x128xf32>
        %28 = vector.broadcast %cst_22 : f32 to vector<1x128xf32>
        %29 = arith.minimumf %28, %27 : vector<1x128xf32>
        %cst_23 = arith.constant 1.66666663 : f32
        %30 = vector.broadcast %cst_23 : f32 to vector<1x128xf32>
        %31 = arith.mulf %29, %30 : vector<1x128xf32>
        %32 = arith.divf %6, %31 : vector<1x128xf32>
        %cst_24 = arith.constant 4.000000e-01 : f32
        %33 = vector.broadcast %cst_24 : f32 to vector<1x128xf32>
        %34 = arith.mulf %33, %32 : vector<1x128xf32>
        %cst_25 = arith.constant 1.600000e+00 : f32
        %35 = vector.broadcast %cst_25 : f32 to vector<1x128xf32>
        %36 = arith.mulf %35, %32 : vector<1x128xf32>
        %cst_26 = arith.constant 3.600000e+03 : f32
        %37 = vector.broadcast %cst_26 : f32 to vector<1x128xf32>
        %38 = arith.addf %36, %37 : vector<1x128xf32>
        %cst_27 = arith.constant 1.000000e+00 : f32
        %39 = vector.broadcast %cst_27 : f32 to vector<1x128xf32>
        %40 = arith.divf %39, %38 : vector<1x128xf32>
        %cst_28 = arith.constant 3.600000e+03 : f32
        %41 = vector.broadcast %cst_28 : f32 to vector<1x128xf32>
        %42 = arith.subf %41, %34 : vector<1x128xf32>
        %43 = arith.mulf %42, %40 : vector<1x128xf32>
        %cst_29 = arith.constant 3.600000e+03 : f32
        %44 = vector.broadcast %cst_29 : f32 to vector<1x128xf32>
        %45 = arith.addf %44, %34 : vector<1x128xf32>
        %46 = arith.mulf %45, %40 : vector<1x128xf32>
        %cst_30 = arith.constant 3.600000e+03 : f32
        %47 = vector.broadcast %cst_30 : f32 to vector<1x128xf32>
        %48 = arith.subf %36, %47 : vector<1x128xf32>
        %49 = arith.mulf %48, %40 : vector<1x128xf32>
        %cst_31 = arith.constant 7.200000e+03 : f32
        %50 = vector.broadcast %cst_31 : f32 to vector<1x128xf32>
        %51 = arith.mulf %50, %40 : vector<1x128xf32>
        %cst_32 = arith.constant dense<0.000000e+00> : vector<1x128xf32>
        %52 = tpu.matmul %arg10, %0, %cst_32 {dimension_numbers = #tpu.dot_dimension_numbers<[1], [0], [0], [1], [0, 0, 1, 1], [], []>} : vector<1x128xf32>, vector<128x128xf32>, vector<1x128xf32> -> vector<1x128xf32>
        %53 = arith.mulf %46, %52 : vector<1x128xf32>
        %54 = arith.mulf %49, %arg10 : vector<1x128xf32>
        %55 = arith.addf %53, %54 : vector<1x128xf32>
        %56 = arith.mulf %51, %22 : vector<1x128xf32>
        %57 = arith.addf %55, %56 : vector<1x128xf32>
        %58 = vector.extract_strided_slice %1 {offsets = [0, 0], sizes = [1, 128], strides = [1, 1]} : vector<4x128xf32> to vector<1x128xf32>
        %cst_33 = arith.constant 9.99999974E-5 : f32
        %59 = vector.broadcast %cst_33 : f32 to vector<1x128xf32>
        %60 = arith.maximumf %57, %59 : vector<1x128xf32>
        %61 = arith.mulf %58, %60 : vector<1x128xf32>
        %cst_34 = arith.constant dense<0.000000e+00> : vector<1x128xf32>
        %62 = tpu.matmul %61, %0, %cst_34 {dimension_numbers = #tpu.dot_dimension_numbers<[1], [0], [0], [1], [0, 0, 1, 1], [], []>} : vector<1x128xf32>, vector<128x128xf32>, vector<1x128xf32> -> vector<1x128xf32>
        %63 = arith.mulf %43, %62 : vector<1x128xf32>
        %64 = arith.addf %63, %57 : vector<1x128xf32>
        %cst_35 = arith.constant 9.99999974E-5 : f32
        %65 = vector.broadcast %cst_35 : f32 to vector<1x128xf32>
        %66 = arith.maximumf %64, %65 : vector<1x128xf32>
        %67 = vector.extract_strided_slice %1 {offsets = [1, 0], sizes = [1, 128], strides = [1, 1]} : vector<4x128xf32> to vector<1x128xf32>
        %68 = arith.mulf %67, %66 : vector<1x128xf32>
        %69 = arith.addf %61, %68 : vector<1x128xf32>
        %cst_36 = arith.constant dense<0.000000e+00> : vector<1x128xf32>
        %70 = tpu.matmul %69, %0, %cst_36 {dimension_numbers = #tpu.dot_dimension_numbers<[1], [0], [0], [1], [0, 0, 1, 1], [], []>} : vector<1x128xf32>, vector<128x128xf32>, vector<1x128xf32> -> vector<1x128xf32>
        %71 = arith.mulf %43, %70 : vector<1x128xf32>
        %72 = arith.addf %71, %57 : vector<1x128xf32>
        %cst_37 = arith.constant 9.99999974E-5 : f32
        %73 = vector.broadcast %cst_37 : f32 to vector<1x128xf32>
        %74 = arith.maximumf %72, %73 : vector<1x128xf32>
        %75 = vector.extract_strided_slice %1 {offsets = [2, 0], sizes = [1, 128], strides = [1, 1]} : vector<4x128xf32> to vector<1x128xf32>
        %76 = arith.mulf %75, %74 : vector<1x128xf32>
        %77 = arith.addf %69, %76 : vector<1x128xf32>
        %cst_38 = arith.constant dense<0.000000e+00> : vector<1x128xf32>
        %78 = tpu.matmul %77, %0, %cst_38 {dimension_numbers = #tpu.dot_dimension_numbers<[1], [0], [0], [1], [0, 0, 1, 1], [], []>} : vector<1x128xf32>, vector<128x128xf32>, vector<1x128xf32> -> vector<1x128xf32>
        %79 = arith.mulf %43, %78 : vector<1x128xf32>
        %80 = arith.addf %79, %57 : vector<1x128xf32>
        %cst_39 = arith.constant 9.99999974E-5 : f32
        %81 = vector.broadcast %cst_39 : f32 to vector<1x128xf32>
        %82 = arith.maximumf %80, %81 : vector<1x128xf32>
        %83 = vector.extract_strided_slice %1 {offsets = [3, 0], sizes = [1, 128], strides = [1, 1]} : vector<4x128xf32> to vector<1x128xf32>
        %84 = arith.mulf %83, %82 : vector<1x128xf32>
        %85 = arith.addf %77, %84 : vector<1x128xf32>
        %86 = arith.index_cast %arg9 : i32 to index
        %c0_40 = arith.constant 0 : index
        %87 = vector.load %arg8[%86, %c0_40] : memref<8x128xf32, #tpu.memory_space<vmem>>, vector<1x128xf32>
        tpu.vector_store %arg8[%86, %c0_40], %85 {strides = array<i32>} : memref<8x128xf32, #tpu.memory_space<vmem>>, vector<1x128xf32>,
        scf.yield %85 : vector<1x128xf32>
      }
      %c8_i32_17 = arith.constant 8 : i32
      %c0_18 = arith.constant 0 : index
      %c0_19 = arith.constant 0 : index
      %20 = vector.load %arg7[%c0_18, %c0_19] : memref<1x128xf32, #tpu.memory_space<vmem>>, vector<1x128xf32>
      tpu.vector_store %arg7[%c0_18, %c0_19], %19 {strides = array<i32>} : memref<1x128xf32, #tpu.memory_space<vmem>>, vector<1x128xf32>,
    } else {
    }
    %c0_8 = arith.constant 0 : index
    %c0_9 = arith.constant 0 : index
    %13 = vector.load %arg8[%c0_8, %c0_9] : memref<8x128xf32, #tpu.memory_space<vmem>>, vector<8x128xf32>
    %c0_10 = arith.constant 0 : index
    %c0_11 = arith.constant 0 : index
    %14 = vector.load %arg3[%c0_10, %c0_11] : memref<128x128xf32, #tpu.memory_space<vmem>>, vector<128x128xf32>
    %cst = arith.constant dense<0.000000e+00> : vector<8x128xf32>
    %15 = tpu.matmul %13, %14, %cst {dimension_numbers = #tpu.dot_dimension_numbers<[1], [0], [0], [1], [0, 0, 1, 1], [], []>} : vector<8x128xf32>, vector<128x128xf32>, vector<8x128xf32> -> vector<8x128xf32>
    %c0_12 = arith.constant 0 : index
    %c0_13 = arith.constant 0 : index
    %16 = vector.load %arg6[%c0_12, %c0_13] : memref<8x128xf32, #tpu.memory_space<vmem>>, vector<8x128xf32>
    tpu.vector_store %arg6[%c0_12, %c0_13], %15 {strides = array<i32>} : memref<8x128xf32, #tpu.memory_space<vmem>>, vector<8x128xf32>,
    return
  }
  func.func @transform_0(%arg0: i32) -> (i32, i32) {
    %c0_i32 = arith.constant 0 : i32
    %c0_i32_0 = arith.constant 0 : i32
    return %arg0, %c0_i32 : i32, i32
  }
  func.func @transform_1(%arg0: i32) -> (i32, i32) {
    %c0_i32 = arith.constant 0 : i32
    %c0_i32_0 = arith.constant 0 : i32
    %c0_i32_1 = arith.constant 0 : i32
    return %c0_i32, %c0_i32_0 : i32, i32
  }
  func.func @transform_2(%arg0: i32) -> (i32, i32) {
    %c0_i32 = arith.constant 0 : i32
    %c0_i32_0 = arith.constant 0 : i32
    %c0_i32_1 = arith.constant 0 : i32
    return %c0_i32, %c0_i32_0 : i32, i32
  }
  func.func @transform_3(%arg0: i32) -> (i32, i32) {
    %c0_i32 = arith.constant 0 : i32
    %c0_i32_0 = arith.constant 0 : i32
    %c0_i32_1 = arith.constant 0 : i32
    return %c0_i32, %c0_i32_0 : i32, i32
  }
  func.func @transform_4(%arg0: i32) -> (i32, i32) {
    %c0_i32 = arith.constant 0 : i32
    %c0_i32_0 = arith.constant 0 : i32
    %c0_i32_1 = arith.constant 0 : i32
    return %c0_i32, %c0_i32_0 : i32, i32
  }
  func.func @transform_5(%arg0: i32) -> (i32, i32) {
    %c0_i32 = arith.constant 0 : i32
    %c0_i32_0 = arith.constant 0 : i32
    return %arg0, %c0_i32 : i32, i32
  }
}

</mosaic_0001>

<llo_original>
// kernel: tpu_custom_call.1
$region0: #{tpu_custom_call.1}
  #allocation0 [shape = 'u32[]', space=smem, size = 0x4, offset = 0x4, fixed_abs, tag = 'smem constant byte address 0x4 - core index']
  #allocation1 [shape = 'u32[144,128]{1,0:T(1,128)}', space=vmem, size = 0x12000, scoped, tag = 'internal scratch']
  #allocation2 [shape = 'f32[1,128]{1,0:T(1,128)}', space=vmem, size = 0x200, scoped, tag = 'scratch operand']
  #allocation3 [shape = 'f32[8,128]{1,0:T(8,128)}', space=vmem, size = 0x1000, scoped, tag = 'scratch operand']
  %s0 = inlined_call_operand.hbm [shape: f32[8,128], index: 0, kind: input, shape index: {}]
  %s1 = inlined_call_operand.hbm [shape: f32[128,128], index: 1, kind: input, shape index: {}]
  %s2 = inlined_call_operand.hbm [shape: f32[128,128], index: 2, kind: input, shape index: {}]
  %s3 = inlined_call_operand.vmem [shape: f32[4,128], index: 3, kind: input, shape index: {}]
  %s4 = inlined_call_operand.vmem [shape: f32[4,128], index: 4, kind: input, shape index: {}]
  %s5 = inlined_call_operand.hbm [shape: f32[8,128], index: 5, kind: output, shape index: {}]
  %s6 = sld [smem:[#allocation0]]
  $region64: #{tpu_custom_call.1} parent=0
    _
  %s8 = ssub.s32 1, %s6
  %s9 = scalar_select 0, %s8, %s6
  $region1: #{tpu_custom_call.1} parent=0
    #allocation4 [shape = 'u8[4096]{0}', space=vmem, size = 0x1000, scoped, tag = 'input window, operand 0, single buffered']
    #allocation5 [shape = 's32[1]{0}', space=sflag, size = 0x4, scoped, tag = 'scoped memory for tpu_custom_call.1']
    #allocation6 [shape = 's32[1]{0}', space=sflag, size = 0x4, scoped, tag = 'scoped memory for tpu_custom_call.1']
    #allocation7 [shape = 'u8[65536]{0}', space=vmem, size = 0x10000, scoped, tag = 'input window, operand 1, single buffered']
    #allocation8 [shape = 's32[1]{0}', space=sflag, size = 0x4, scoped, tag = 'scoped memory for tpu_custom_call.1']
    #allocation9 [shape = 'u8[65536]{0}', space=vmem, size = 0x10000, scoped, tag = 'input window, operand 2, single buffered']
    #allocation10 [shape = 'u8[4096]{0}', space=vmem, size = 0x1000, scoped, tag = 'output window, operand 0, single buffered']
    %10 = vsyncpa [#allocation5], 0
    %11 = vsyncpa [#allocation8], 0
    %12 = vsyncpa [#allocation6], 0
    // Predicated region
    $region2: #{tpu_custom_call.1} parent=1 // pred_check
      _
    $region3: #{tpu_custom_call.1} parent=1 // pred_check_branch
      %14 = sbr.rel (0) target = $region5
    $region4: #{tpu_custom_call.1} parent=1 // pred_region
      %s16 = ssub.s32 128, 128
      %17 = vsyncadd [#allocation5], %s16
      %s19 = sshll.u32 [#allocation4], 4
      %s20 = int_to_ptr.vmem [resolvable:$true] %s19
      %22 = dma.hbm_to_vmem [thread:$0]  %s0, 128, %s20, [#allocation5]
    $region5: #{tpu_custom_call.1} parent=1 // pred_fallthru
      _
    // Predicated region
    $region6: #{tpu_custom_call.1} parent=1 // pred_check
      _
    $region7: #{tpu_custom_call.1} parent=1 // pred_check_branch
      %24 = sbr.rel (0) target = $region9
    $region8: #{tpu_custom_call.1} parent=1 // pred_region
      %s26 = ssub.s32 2048, 2048
      %27 = vsyncadd [#allocation8], %s26
      %s28 = sshll.u32 [#allocation7], 4
      %s29 = int_to_ptr.vmem [resolvable:$true] %s28
      %34 = dma.hbm_to_vmem [thread:$0]  %s1, 2048, %s29, [#allocation8], 128, 128, 8
    $region9: #{tpu_custom_call.1} parent=1 // pred_fallthru
      _
    // Predicated region
    $region10: #{tpu_custom_call.1} parent=1 // pred_check
      _
    $region11: #{tpu_custom_call.1} parent=1 // pred_check_branch
      %36 = sbr.rel (0) target = $region13
    $region12: #{tpu_custom_call.1} parent=1 // pred_region
      %s38 = ssub.s32 2048, 2048
      %39 = vsyncadd [#allocation8], %s38
      %s40 = sshll.u32 [#allocation9], 4
      %s41 = int_to_ptr.vmem [resolvable:$true] %s40
      %46 = dma.hbm_to_vmem [thread:$0]  %s2, 2048, %s41, [#allocation8], 128, 128, 8
    $region13: #{tpu_custom_call.1} parent=1 // pred_fallthru
      _
    // Predicated region
    $region14: #{tpu_custom_call.1} parent=1 // pred_check
      _
    $region15: #{tpu_custom_call.1} parent=1 // pred_check_branch
      %48 = sbr.rel (0) target = $region17
    $region16: #{tpu_custom_call.1} parent=1 // pred_region
      _
    $region17: #{tpu_custom_call.1} parent=1 // pred_fallthru
      _
    // Predicated region
    $region18: #{tpu_custom_call.1} parent=1 // pred_check
      _
    $region19: #{tpu_custom_call.1} parent=1 // pred_check_branch
      %50 = sbr.rel (0) target = $region21
    $region20: #{tpu_custom_call.1} parent=1 // pred_region
      _
    $region21: #{tpu_custom_call.1} parent=1 // pred_fallthru
      _
    // Predicated region
    $region22: #{tpu_custom_call.1} parent=1 // pred_check
      _
    $region23: #{tpu_custom_call.1} parent=1 // pred_check_branch
      %52 = sbr.rel (0) target = $region25
    $region24: #{tpu_custom_call.1} parent=1 // pred_region
      %53 = dma.done [#allocation5], 128
    $region25: #{tpu_custom_call.1} parent=1 // pred_fallthru
      _
    // Predicated region
    $region26: #{tpu_custom_call.1} parent=1 // pred_check
      _
    $region27: #{tpu_custom_call.1} parent=1 // pred_check_branch
      %55 = sbr.rel (0) target = $region29
    $region28: #{tpu_custom_call.1} parent=1 // pred_region
      %56 = dma.done [#allocation8], 2048
    $region29: #{tpu_custom_call.1} parent=1 // pred_fallthru
      _
    // Predicated region
    $region30: #{tpu_custom_call.1} parent=1 // pred_check
      _
    $region31: #{tpu_custom_call.1} parent=1 // pred_check_branch
      %58 = sbr.rel (0) target = $region33
    $region32: #{tpu_custom_call.1} parent=1 // pred_region
      %59 = dma.done [#allocation8], 2048
    $region33: #{tpu_custom_call.1} parent=1 // pred_fallthru
      _
    %v60 = vld [vmem:[#allocation7] sm:$0xff]
    %v61 = vld [vmem:[#allocation7 + $0x8] sm:$0xff]
    %v62 = vld [vmem:[#allocation7 + $0x10] sm:$0xff]
    %v63 = vld [vmem:[#allocation7 + $0x18] sm:$0xff]
    %v64 = vld [vmem:[#allocation7 + $0x20] sm:$0xff]
    %v65 = vld [vmem:[#allocation7 + $0x28] sm:$0xff]
    %v66 = vld [vmem:[#allocation7 + $0x30] sm:$0xff]
    %v67 = vld [vmem:[#allocation7 + $0x38] sm:$0xff]
    %v68 = vld [vmem:[#allocation7 + $0x40] sm:$0xff]
    %v69 = vld [vmem:[#allocation7 + $0x48] sm:$0xff]
    %v70 = vld [vmem:[#allocation7 + $0x50] sm:$0xff]
    %v71 = vld [vmem:[#allocation7 + $0x58] sm:$0xff]
    %v72 = vld [vmem:[#allocation7 + $0x60] sm:$0xff]
    %v73 = vld [vmem:[#allocation7 + $0x68] sm:$0xff]
    %v74 = vld [vmem:[#allocation7 + $0x70] sm:$0xff]
    %v75 = vld [vmem:[#allocation7 + $0x78] sm:$0xff]
    %v76 = vld [vmem:[%s3] sm:$0xf]
    %v77 = vld [vmem:[%s4] sm:$0xf]
    %p78 = scmp.eq.s32.totalorder 0, 0
    // Predicated region
    $region34: #{tpu_custom_call.1} parent=1 // pred_check
      %p79 = pneg %p78
    $region35: #{tpu_custom_call.1} parent=1 // pred_check_branch
      %81 = sbr.rel (%p79) target = $region37
    $region36: #{tpu_custom_call.1} parent=1 // pred_region
      %v82 = vld [vmem:[#allocation4] sm:$0x1]
      %83 = vst [vmem:[#allocation3] sm:$0x1] %v82
      loop: start=1, step=1, limit=8
      $region38: #{tpu_custom_call.1} parent=36 // loop_pre_header
        _
      $region39: #{tpu_custom_call.1} parent=36 // loop_header
        %s85 = sphi 1, %s89
        %p86 = scmp.ge.s32.totalorder %s85, 8
        %v90 = vphi %v82, %v459
      $region40: #{tpu_custom_call.1} parent=36 // loop_header_branch
        %88 = sbr.rel (%p86) target = $region44
      $region41: #{tpu_custom_call.1} parent=36 // loop_body
        %s91 = scalar_lea.vmem [#allocation4], %s85
        %v92 = vld [vmem:[%s91] sm:$0x1]
        %v93 = vmul.f32 %v90, %v77
        %v95 = vrot.slane %v77, 1
        %v97 = vpow.f32 %v93, %v95
        %v99 = vrot.slane %v97, 6
        %v101 = vmul.f32 %v77, %v99
        %v102 = vmax.f32 %v101, 0.3
        %v103 = vmin.f32 %v102, 15.0
        %v104 = vmul.f32 %v103, 1.6666666
        %v106 = vrot.slane %v104, 7
        %v108 = vrcp.pop %v106
        %v109 = vmul.f32 %v77, %v108
        %v110 = vmul.f32 %v109, 0.4
        %v111 = vmul.f32 %v109, 1.6
        %v112 = vadd.f32 %v111, 3600.0
        %v113 = vrcp.pop %v112
        %v114 = vmul.f32 1.0, %v113
        %v115 = vsub.f32 3600.0, %v110
        %v116 = vmul.f32 %v115, %v114
        %v117 = vadd.f32 %v110, 3600.0
        %v118 = vmul.f32 %v117, %v114
        %v119 = vsub.f32 %v111, 3600.0
        %v120 = vmul.f32 %v119, %v114
        %v121 = vmul.f32 %v114, 7200.0
        %122 = vmatprep.subr.mxu0 0.0
        %123 = vmatpush1.msra.mxu0 %v60
        %124 = vmatprep.subr.mxu0 0.0
        %125 = vmatpush1.msra.mxu0 %v61
        %126 = vmatprep.subr.mxu0 0.0
        %127 = vmatpush1.msra.mxu0 %v62
        %128 = vmatprep.subr.mxu0 0.0
        %129 = vmatpush1.msra.mxu0 %v63
        %130 = vmatprep.subr.mxu0 0.0
        %131 = vmatpush1.msra.mxu0 %v64
        %132 = vmatprep.subr.mxu0 0.0
        %133 = vmatpush1.msra.mxu0 %v65
        %134 = vmatprep.subr.mxu0 0.0
        %135 = vmatpush1.msra.mxu0 %v66
        %136 = vmatprep.subr.mxu0 0.0
        %137 = vmatpush1.msra.mxu0 %v67
        %138 = vmatprep.subr.mxu0 0.0
        %139 = vmatpush1.msra.mxu0 %v68
        %140 = vmatprep.subr.mxu0 0.0
        %141 = vmatpush1.msra.mxu0 %v69
        %142 = vmatprep.subr.mxu0 0.0
        %143 = vmatpush1.msra.mxu0 %v70
        %144 = vmatprep.subr.mxu0 0.0
        %145 = vmatpush1.msra.mxu0 %v71
        %146 = vmatprep.subr.mxu0 0.0
        %147 = vmatpush1.msra.mxu0 %v72
        %148 = vmatprep.subr.mxu0 0.0
        %149 = vmatpush1.msra.mxu0 %v73
        %150 = vmatprep.subr.mxu0 0.0
        %151 = vmatpush1.msra.mxu0 %v74
        %152 = vmatprep.subr.mxu0 0.0
        %153 = vmatpush1.msra.mxu0 %v75
        %154 = vmatprep.subr.mxu0 0.0
        %155 = vmatpush1.msra.mxu0 0.0
        %156 = vmatprep.subr.mxu0 0.0
        %157 = vmatpush1.msra.mxu0 0.0
        %158 = vmatprep.subr.mxu0 0.0
        %159 = vmatpush1.msra.mxu0 0.0
        %160 = vmatprep.subr.mxu0 0.0
        %161 = vmatpush1.msra.mxu0 0.0
        %162 = vmatprep.subr.mxu0 0.0
        %163 = vmatpush1.msra.mxu0 0.0
        %164 = vmatprep.subr.mxu0 0.0
        %165 = vmatpush1.msra.mxu0 0.0
        %166 = vmatprep.subr.mxu0 0.0
        %167 = vmatpush1.msra.mxu0 0.0
        %168 = vmatprep.subr.mxu0 0.0
        %169 = vmatpush1.msra.mxu0 0.0
        %170 = vmatprep.subr.mxu0 0.0
        %171 = vmatpush1.msra.mxu0 0.0
        %172 = vmatprep.subr.mxu0 0.0
        %173 = vmatpush1.msra.mxu0 0.0
        %174 = vmatprep.subr.mxu0 0.0
        %175 = vmatpush1.msra.mxu0 0.0
        %176 = vmatprep.subr.mxu0 0.0
        %177 = vmatpush1.msra.mxu0 0.0
        %178 = vmatprep.subr.mxu0 0.0
        %179 = vmatpush1.msra.mxu0 0.0
        %180 = vmatprep.subr.mxu0 0.0
        %181 = vmatpush1.msra.mxu0 0.0
        %182 = vmatprep.subr.mxu0 0.0
        %183 = vmatpush1.msra.mxu0 0.0
        %184 = vmatprep.subr.mxu0 0.0
        %185 = vmatpush1.msra.mxu0 0.0
        %186 = vmatprep.mubr.f32.mxu0 0.0
        %187 = vmatmul.mubr.f32.gmra.mrb[0].mxu0 %v90
        %v188 = vpop.f32.mrb[0].mxu0
        %v189 = vadd.f32 0.0, %v188
        %v190 = vpop.f32.mrb[0].mxu0
        %191 = vdwg.mxu0
        %v193 = vrot.slane %v189, 5
        %v195 = vmul.f32 %v118, %v193
        %v197 = vrot.slane %v90, 5
        %v199 = vmul.f32 %v120, %v197
        %v200 = vadd.f32 %v195, %v199
        %v202 = vrot.slane %v92, 5
        %v204 = vmul.f32 %v121, %v202
        %v205 = vadd.f32 %v200, %v204
        %v206 = vmax.f32 %v205, 0.0001
        %v208 = vrot.slane %v206, 3
        %v210 = vmul.f32 %v76, %v208
        %211 = vmatprep.subr.mxu0 0.0
        %212 = vmatpush1.msra.mxu0 %v60
        %213 = vmatprep.subr.mxu0 0.0
        %214 = vmatpush1.msra.mxu0 %v61
        %215 = vmatprep.subr.mxu0 0.0
        %216 = vmatpush1.msra.mxu0 %v62
        %217 = vmatprep.subr.mxu0 0.0
        %218 = vmatpush1.msra.mxu0 %v63
        %219 = vmatprep.subr.mxu0 0.0
        %220 = vmatpush1.msra.mxu0 %v64
        %221 = vmatprep.subr.mxu0 0.0
        %222 = vmatpush1.msra.mxu0 %v65
        %223 = vmatprep.subr.mxu0 0.0
        %224 = vmatpush1.msra.mxu0 %v66
        %225 = vmatprep.subr.mxu0 0.0
        %226 = vmatpush1.msra.mxu0 %v67
        %227 = vmatprep.subr.mxu0 0.0
        %228 = vmatpush1.msra.mxu0 %v68
        %229 = vmatprep.subr.mxu0 0.0
        %230 = vmatpush1.msra.mxu0 %v69
        %231 = vmatprep.subr.mxu0 0.0
        %232 = vmatpush1.msra.mxu0 %v70
        %233 = vmatprep.subr.mxu0 0.0
        %234 = vmatpush1.msra.mxu0 %v71
        %235 = vmatprep.subr.mxu0 0.0
        %236 = vmatpush1.msra.mxu0 %v72
        %237 = vmatprep.subr.mxu0 0.0
        %238 = vmatpush1.msra.mxu0 %v73
        %239 = vmatprep.subr.mxu0 0.0
        %240 = vmatpush1.msra.mxu0 %v74
        %241 = vmatprep.subr.mxu0 0.0
        %242 = vmatpush1.msra.mxu0 %v75
        %243 = vmatprep.subr.mxu0 0.0
        %244 = vmatpush1.msra.mxu0 0.0
        %245 = vmatprep.subr.mxu0 0.0
        %246 = vmatpush1.msra.mxu0 0.0
        %247 = vmatprep.subr.mxu0 0.0
        %248 = vmatpush1.msra.mxu0 0.0
        %249 = vmatprep.subr.mxu0 0.0
        %250 = vmatpush1.msra.mxu0 0.0
        %251 = vmatprep.subr.mxu0 0.0
        %252 = vmatpush1.msra.mxu0 0.0
        %253 = vmatprep.subr.mxu0 0.0
        %254 = vmatpush1.msra.mxu0 0.0
        %255 = vmatprep.subr.mxu0 0.0
        %256 = vmatpush1.msra.mxu0 0.0
        %257 = vmatprep.subr.mxu0 0.0
        %258 = vmatpush1.msra.mxu0 0.0
        %259 = vmatprep.subr.mxu0 0.0
        %260 = vmatpush1.msra.mxu0 0.0
        %261 = vmatprep.subr.mxu0 0.0
        %262 = vmatpush1.msra.mxu0 0.0
        %263 = vmatprep.subr.mxu0 0.0
        %264 = vmatpush1.msra.mxu0 0.0
        %265 = vmatprep.subr.mxu0 0.0
        %266 = vmatpush1.msra.mxu0 0.0
        %267 = vmatprep.subr.mxu0 0.0
        %268 = vmatpush1.msra.mxu0 0.0
        %269 = vmatprep.subr.mxu0 0.0
        %270 = vmatpush1.msra.mxu0 0.0
        %271 = vmatprep.subr.mxu0 0.0
        %272 = vmatpush1.msra.mxu0 0.0
        %273 = vmatprep.subr.mxu0 0.0
        %274 = vmatpush1.msra.mxu0 0.0
        %275 = vmatprep.mubr.f32.mxu0 0.0
        %276 = vmatmul.mubr.f32.gmra.mrb[0].mxu0 %v210
        %v277 = vpop.f32.mrb[0].mxu0
        %v278 = vadd.f32 0.0, %v277
        %v279 = vpop.f32.mrb[0].mxu0
        %280 = vdwg.mxu0
        %v282 = vrot.slane %v278, 5
        %v284 = vmul.f32 %v116, %v282
        %v285 = vadd.f32 %v284, %v205
        %v286 = vmax.f32 %v285, 0.0001
        %v288 = vrot.slane %v286, 2
        %v290 = vmul.f32 %v76, %v288
        %v292 = vrot.slane %v290, 1
        %v294 = vadd.f32 %v210, %v292
        %295 = vmatprep.subr.mxu0 0.0
        %296 = vmatpush1.msra.mxu0 %v60
        %297 = vmatprep.subr.mxu0 0.0
        %298 = vmatpush1.msra.mxu0 %v61
        %299 = vmatprep.subr.mxu0 0.0
        %300 = vmatpush1.msra.mxu0 %v62
        %301 = vmatprep.subr.mxu0 0.0
        %302 = vmatpush1.msra.mxu0 %v63
        %303 = vmatprep.subr.mxu0 0.0
        %304 = vmatpush1.msra.mxu0 %v64
        %305 = vmatprep.subr.mxu0 0.0
        %306 = vmatpush1.msra.mxu0 %v65
        %307 = vmatprep.subr.mxu0 0.0
        %308 = vmatpush1.msra.mxu0 %v66
        %309 = vmatprep.subr.mxu0 0.0
        %310 = vmatpush1.msra.mxu0 %v67
        %311 = vmatprep.subr.mxu0 0.0
        %312 = vmatpush1.msra.mxu0 %v68
        %313 = vmatprep.subr.mxu0 0.0
        %314 = vmatpush1.msra.mxu0 %v69
        %315 = vmatprep.subr.mxu0 0.0
        %316 = vmatpush1.msra.mxu0 %v70
        %317 = vmatprep.subr.mxu0 0.0
        %318 = vmatpush1.msra.mxu0 %v71
        %319 = vmatprep.subr.mxu0 0.0
        %320 = vmatpush1.msra.mxu0 %v72
        %321 = vmatprep.subr.mxu0 0.0
        %322 = vmatpush1.msra.mxu0 %v73
        %323 = vmatprep.subr.mxu0 0.0
        %324 = vmatpush1.msra.mxu0 %v74
        %325 = vmatprep.subr.mxu0 0.0
        %326 = vmatpush1.msra.mxu0 %v75
        %327 = vmatprep.subr.mxu0 0.0
        %328 = vmatpush1.msra.mxu0 0.0
        %329 = vmatprep.subr.mxu0 0.0
        %330 = vmatpush1.msra.mxu0 0.0
        %331 = vmatprep.subr.mxu0 0.0
        %332 = vmatpush1.msra.mxu0 0.0
        %333 = vmatprep.subr.mxu0 0.0
        %334 = vmatpush1.msra.mxu0 0.0
        %335 = vmatprep.subr.mxu0 0.0
        %336 = vmatpush1.msra.mxu0 0.0
        %337 = vmatprep.subr.mxu0 0.0
        %338 = vmatpush1.msra.mxu0 0.0
        %339 = vmatprep.subr.mxu0 0.0
        %340 = vmatpush1.msra.mxu0 0.0
        %341 = vmatprep.subr.mxu0 0.0
        %342 = vmatpush1.msra.mxu0 0.0
        %343 = vmatprep.subr.mxu0 0.0
        %344 = vmatpush1.msra.mxu0 0.0
        %345 = vmatprep.subr.mxu0 0.0
        %346 = vmatpush1.msra.mxu0 0.0
        %347 = vmatprep.subr.mxu0 0.0
        %348 = vmatpush1.msra.mxu0 0.0
        %349 = vmatprep.subr.mxu0 0.0
        %350 = vmatpush1.msra.mxu0 0.0
        %351 = vmatprep.subr.mxu0 0.0
        %352 = vmatpush1.msra.mxu0 0.0
        %353 = vmatprep.subr.mxu0 0.0
        %354 = vmatpush1.msra.mxu0 0.0
        %355 = vmatprep.subr.mxu0 0.0
        %356 = vmatpush1.msra.mxu0 0.0
        %357 = vmatprep.subr.mxu0 0.0
        %358 = vmatpush1.msra.mxu0 0.0
        %359 = vmatprep.mubr.f32.mxu0 0.0
        %360 = vmatmul.mubr.f32.gmra.mrb[0].mxu0 %v294
        %v361 = vpop.f32.mrb[0].mxu0
        %v362 = vadd.f32 0.0, %v361
        %v363 = vpop.f32.mrb[0].mxu0
        %364 = vdwg.mxu0
        %v366 = vrot.slane %v362, 5
        %v368 = vmul.f32 %v116, %v366
        %v369 = vadd.f32 %v368, %v205
        %v370 = vmax.f32 %v369, 0.0001
        %v372 = vrot.slane %v370, 1
        %v374 = vmul.f32 %v76, %v372
        %v376 = vrot.slane %v374, 2
        %v378 = vadd.f32 %v294, %v376
        %379 = vmatprep.subr.mxu0 0.0
        %380 = vmatpush1.msra.mxu0 %v60
        %381 = vmatprep.subr.mxu0 0.0
        %382 = vmatpush1.msra.mxu0 %v61
        %383 = vmatprep.subr.mxu0 0.0
        %384 = vmatpush1.msra.mxu0 %v62
        %385 = vmatprep.subr.mxu0 0.0
        %386 = vmatpush1.msra.mxu0 %v63
        %387 = vmatprep.subr.mxu0 0.0
        %388 = vmatpush1.msra.mxu0 %v64
        %389 = vmatprep.subr.mxu0 0.0
        %390 = vmatpush1.msra.mxu0 %v65
        %391 = vmatprep.subr.mxu0 0.0
        %392 = vmatpush1.msra.mxu0 %v66
        %393 = vmatprep.subr.mxu0 0.0
        %394 = vmatpush1.msra.mxu0 %v67
        %395 = vmatprep.subr.mxu0 0.0
        %396 = vmatpush1.msra.mxu0 %v68
        %397 = vmatprep.subr.mxu0 0.0
        %398 = vmatpush1.msra.mxu0 %v69
        %399 = vmatprep.subr.mxu0 0.0
        %400 = vmatpush1.msra.mxu0 %v70
        %401 = vmatprep.subr.mxu0 0.0
        %402 = vmatpush1.msra.mxu0 %v71
        %403 = vmatprep.subr.mxu0 0.0
        %404 = vmatpush1.msra.mxu0 %v72
        %405 = vmatprep.subr.mxu0 0.0
        %406 = vmatpush1.msra.mxu0 %v73
        %407 = vmatprep.subr.mxu0 0.0
        %408 = vmatpush1.msra.mxu0 %v74
        %409 = vmatprep.subr.mxu0 0.0
        %410 = vmatpush1.msra.mxu0 %v75
        %411 = vmatprep.subr.mxu0 0.0
        %412 = vmatpush1.msra.mxu0 0.0
        %413 = vmatprep.subr.mxu0 0.0
        %414 = vmatpush1.msra.mxu0 0.0
        %415 = vmatprep.subr.mxu0 0.0
        %416 = vmatpush1.msra.mxu0 0.0
        %417 = vmatprep.subr.mxu0 0.0
        %418 = vmatpush1.msra.mxu0 0.0
        %419 = vmatprep.subr.mxu0 0.0
        %420 = vmatpush1.msra.mxu0 0.0
        %421 = vmatprep.subr.mxu0 0.0
        %422 = vmatpush1.msra.mxu0 0.0
        %423 = vmatprep.subr.mxu0 0.0
        %424 = vmatpush1.msra.mxu0 0.0
        %425 = vmatprep.subr.mxu0 0.0
        %426 = vmatpush1.msra.mxu0 0.0
        %427 = vmatprep.subr.mxu0 0.0
        %428 = vmatpush1.msra.mxu0 0.0
        %429 = vmatprep.subr.mxu0 0.0
        %430 = vmatpush1.msra.mxu0 0.0
        %431 = vmatprep.subr.mxu0 0.0
        %432 = vmatpush1.msra.mxu0 0.0
        %433 = vmatprep.subr.mxu0 0.0
        %434 = vmatpush1.msra.mxu0 0.0
        %435 = vmatprep.subr.mxu0 0.0
        %436 = vmatpush1.msra.mxu0 0.0
        %437 = vmatprep.subr.mxu0 0.0
        %438 = vmatpush1.msra.mxu0 0.0
        %439 = vmatprep.subr.mxu0 0.0
        %440 = vmatpush1.msra.mxu0 0.0
        %441 = vmatprep.subr.mxu0 0.0
        %442 = vmatpush1.msra.mxu0 0.0
        %443 = vmatprep.mubr.f32.mxu0 0.0
        %444 = vmatmul.mubr.f32.gmra.mrb[0].mxu0 %v378
        %v445 = vpop.f32.mrb[0].mxu0
        %v446 = vadd.f32 0.0, %v445
        %v447 = vpop.f32.mrb[0].mxu0
        %448 = vdwg.mxu0
        %v450 = vrot.slane %v446, 5
        %v452 = vmul.f32 %v116, %v450
        %v453 = vadd.f32 %v452, %v205
        %v454 = vmax.f32 %v453, 0.0001
        %v455 = vmul.f32 %v76, %v454
        %v457 = vrot.slane %v455, 3
        %v459 = vadd.f32 %v378, %v457
        %s460 = scalar_lea.vmem [#allocation3], %s85
        %461 = vst [vmem:[%s460] sm:$0x1] %v459
      $region42: #{tpu_custom_call.1} parent=36 // loop_footer
        %s89 = sadd.s32 1, %s85
      $region43: #{tpu_custom_call.1} parent=36 // loop_footer_branch
        %84 = sbr.rel target = $region39
      $region44: #{tpu_custom_call.1} parent=36 // loop_exit
        _
      %462 = vst [vmem:[#allocation2] sm:$0x1] %v90
    $region37: #{tpu_custom_call.1} parent=1 // pred_fallthru
      _
    %p463 = scmp.gt.s32.totalorder 0, 0
    // Predicated region
    $region45: #{tpu_custom_call.1} parent=1 // pred_check
      %p464 = pneg %p463
    $region46: #{tpu_custom_call.1} parent=1 // pred_check_branch
      %466 = sbr.rel (%p464) target = $region48
    $region47: #{tpu_custom_call.1} parent=1 // pred_region
      %v467 = vld [vmem:[#allocation2] sm:$0x1]
      loop: start=0, step=1, limit=8
      $region49: #{tpu_custom_call.1} parent=47 // loop_pre_header
        _
      $region50: #{tpu_custom_call.1} parent=47 // loop_header
        %s469 = sphi 0, %s473
        %p470 = scmp.ge.s32.totalorder %s469, 8
        %v474 = vphi %v467, %v843
      $region51: #{tpu_custom_call.1} parent=47 // loop_header_branch
        %472 = sbr.rel (%p470) target = $region55
      $region52: #{tpu_custom_call.1} parent=47 // loop_body
        %s475 = scalar_lea.vmem [#allocation4], %s469
        %v476 = vld [vmem:[%s475] sm:$0x1]
        %v477 = vmul.f32 %v474, %v77
        %v479 = vrot.slane %v77, 1
        %v481 = vpow.f32 %v477, %v479
        %v483 = vrot.slane %v481, 6
        %v485 = vmul.f32 %v77, %v483
        %v486 = vmax.f32 %v485, 0.3
        %v487 = vmin.f32 %v486, 15.0
        %v488 = vmul.f32 %v487, 1.6666666
        %v490 = vrot.slane %v488, 7
        %v492 = vrcp.pop %v490
        %v493 = vmul.f32 %v77, %v492
        %v494 = vmul.f32 %v493, 0.4
        %v495 = vmul.f32 %v493, 1.6
        %v496 = vadd.f32 %v495, 3600.0
        %v497 = vrcp.pop %v496
        %v498 = vmul.f32 1.0, %v497
        %v499 = vsub.f32 3600.0, %v494
        %v500 = vmul.f32 %v499, %v498
        %v501 = vadd.f32 %v494, 3600.0
        %v502 = vmul.f32 %v501, %v498
        %v503 = vsub.f32 %v495, 3600.0
        %v504 = vmul.f32 %v503, %v498
        %v505 = vmul.f32 %v498, 7200.0
        %506 = vmatprep.subr.mxu0 0.0
        %507 = vmatpush1.msra.mxu0 %v60
        %508 = vmatprep.subr.mxu0 0.0
        %509 = vmatpush1.msra.mxu0 %v61
        %510 = vmatprep.subr.mxu0 0.0
        %511 = vmatpush1.msra.mxu0 %v62
        %512 = vmatprep.subr.mxu0 0.0
        %513 = vmatpush1.msra.mxu0 %v63
        %514 = vmatprep.subr.mxu0 0.0
        %515 = vmatpush1.msra.mxu0 %v64
        %516 = vmatprep.subr.mxu0 0.0
        %517 = vmatpush1.msra.mxu0 %v65
        %518 = vmatprep.subr.mxu0 0.0
        %519 = vmatpush1.msra.mxu0 %v66
        %520 = vmatprep.subr.mxu0 0.0
        %521 = vmatpush1.msra.mxu0 %v67
        %522 = vmatprep.subr.mxu0 0.0
        %523 = vmatpush1.msra.mxu0 %v68
        %524 = vmatprep.subr.mxu0 0.0
        %525 = vmatpush1.msra.mxu0 %v69
        %526 = vmatprep.subr.mxu0 0.0
        %527 = vmatpush1.msra.mxu0 %v70
        %528 = vmatprep.subr.mxu0 0.0
        %529 = vmatpush1.msra.mxu0 %v71
        %530 = vmatprep.subr.mxu0 0.0
        %531 = vmatpush1.msra.mxu0 %v72
        %532 = vmatprep.subr.mxu0 0.0
        %533 = vmatpush1.msra.mxu0 %v73
        %534 = vmatprep.subr.mxu0 0.0
        %535 = vmatpush1.msra.mxu0 %v74
        %536 = vmatprep.subr.mxu0 0.0
        %537 = vmatpush1.msra.mxu0 %v75
        %538 = vmatprep.subr.mxu0 0.0
        %539 = vmatpush1.msra.mxu0 0.0
        %540 = vmatprep.subr.mxu0 0.0
        %541 = vmatpush1.msra.mxu0 0.0
        %542 = vmatprep.subr.mxu0 0.0
        %543 = vmatpush1.msra.mxu0 0.0
        %544 = vmatprep.subr.mxu0 0.0
        %545 = vmatpush1.msra.mxu0 0.0
        %546 = vmatprep.subr.mxu0 0.0
        %547 = vmatpush1.msra.mxu0 0.0
        %548 = vmatprep.subr.mxu0 0.0
        %549 = vmatpush1.msra.mxu0 0.0
        %550 = vmatprep.subr.mxu0 0.0
        %551 = vmatpush1.msra.mxu0 0.0
        %552 = vmatprep.subr.mxu0 0.0
        %553 = vmatpush1.msra.mxu0 0.0
        %554 = vmatprep.subr.mxu0 0.0
        %555 = vmatpush1.msra.mxu0 0.0
        %556 = vmatprep.subr.mxu0 0.0
        %557 = vmatpush1.msra.mxu0 0.0
        %558 = vmatprep.subr.mxu0 0.0
        %559 = vmatpush1.msra.mxu0 0.0
        %560 = vmatprep.subr.mxu0 0.0
        %561 = vmatpush1.msra.mxu0 0.0
        %562 = vmatprep.subr.mxu0 0.0
        %563 = vmatpush1.msra.mxu0 0.0
        %564 = vmatprep.subr.mxu0 0.0
        %565 = vmatpush1.msra.mxu0 0.0
        %566 = vmatprep.subr.mxu0 0.0
        %567 = vmatpush1.msra.mxu0 0.0
        %568 = vmatprep.subr.mxu0 0.0
        %569 = vmatpush1.msra.mxu0 0.0
        %570 = vmatprep.mubr.f32.mxu0 0.0
        %571 = vmatmul.mubr.f32.gmra.mrb[0].mxu0 %v474
        %v572 = vpop.f32.mrb[0].mxu0
        %v573 = vadd.f32 0.0, %v572
        %v574 = vpop.f32.mrb[0].mxu0
        %575 = vdwg.mxu0
        %v577 = vrot.slane %v573, 5
        %v579 = vmul.f32 %v502, %v577
        %v581 = vrot.slane %v474, 5
        %v583 = vmul.f32 %v504, %v581
        %v584 = vadd.f32 %v579, %v583
        %v586 = vrot.slane %v476, 5
        %v588 = vmul.f32 %v505, %v586
        %v589 = vadd.f32 %v584, %v588
        %v590 = vmax.f32 %v589, 0.0001
        %v592 = vrot.slane %v590, 3
        %v594 = vmul.f32 %v76, %v592
        %595 = vmatprep.subr.mxu0 0.0
        %596 = vmatpush1.msra.mxu0 %v60
        %597 = vmatprep.subr.mxu0 0.0
        %598 = vmatpush1.msra.mxu0 %v61
        %599 = vmatprep.subr.mxu0 0.0
        %600 = vmatpush1.msra.mxu0 %v62
        %601 = vmatprep.subr.mxu0 0.0
        %602 = vmatpush1.msra.mxu0 %v63
        %603 = vmatprep.subr.mxu0 0.0
        %604 = vmatpush1.msra.mxu0 %v64
        %605 = vmatprep.subr.mxu0 0.0
        %606 = vmatpush1.msra.mxu0 %v65
        %607 = vmatprep.subr.mxu0 0.0
        %608 = vmatpush1.msra.mxu0 %v66
        %609 = vmatprep.subr.mxu0 0.0
        %610 = vmatpush1.msra.mxu0 %v67
        %611 = vmatprep.subr.mxu0 0.0
        %612 = vmatpush1.msra.mxu0 %v68
        %613 = vmatprep.subr.mxu0 0.0
        %614 = vmatpush1.msra.mxu0 %v69
        %615 = vmatprep.subr.mxu0 0.0
        %616 = vmatpush1.msra.mxu0 %v70
        %617 = vmatprep.subr.mxu0 0.0
        %618 = vmatpush1.msra.mxu0 %v71
        %619 = vmatprep.subr.mxu0 0.0
        %620 = vmatpush1.msra.mxu0 %v72
        %621 = vmatprep.subr.mxu0 0.0
        %622 = vmatpush1.msra.mxu0 %v73
        %623 = vmatprep.subr.mxu0 0.0
        %624 = vmatpush1.msra.mxu0 %v74
        %625 = vmatprep.subr.mxu0 0.0
        %626 = vmatpush1.msra.mxu0 %v75
        %627 = vmatprep.subr.mxu0 0.0
        %628 = vmatpush1.msra.mxu0 0.0
        %629 = vmatprep.subr.mxu0 0.0
        %630 = vmatpush1.msra.mxu0 0.0
        %631 = vmatprep.subr.mxu0 0.0
        %632 = vmatpush1.msra.mxu0 0.0
        %633 = vmatprep.subr.mxu0 0.0
        %634 = vmatpush1.msra.mxu0 0.0
        %635 = vmatprep.subr.mxu0 0.0
        %636 = vmatpush1.msra.mxu0 0.0
        %637 = vmatprep.subr.mxu0 0.0
        %638 = vmatpush1.msra.mxu0 0.0
        %639 = vmatprep.subr.mxu0 0.0
        %640 = vmatpush1.msra.mxu0 0.0
        %641 = vmatprep.subr.mxu0 0.0
        %642 = vmatpush1.msra.mxu0 0.0
        %643 = vmatprep.subr.mxu0 0.0
        %644 = vmatpush1.msra.mxu0 0.0
        %645 = vmatprep.subr.mxu0 0.0
        %646 = vmatpush1.msra.mxu0 0.0
        %647 = vmatprep.subr.mxu0 0.0
        %648 = vmatpush1.msra.mxu0 0.0
        %649 = vmatprep.subr.mxu0 0.0
        %650 = vmatpush1.msra.mxu0 0.0
        %651 = vmatprep.subr.mxu0 0.0
        %652 = vmatpush1.msra.mxu0 0.0
        %653 = vmatprep.subr.mxu0 0.0
        %654 = vmatpush1.msra.mxu0 0.0
        %655 = vmatprep.subr.mxu0 0.0
        %656 = vmatpush1.msra.mxu0 0.0
        %657 = vmatprep.subr.mxu0 0.0
        %658 = vmatpush1.msra.mxu0 0.0
        %659 = vmatprep.mubr.f32.mxu0 0.0
        %660 = vmatmul.mubr.f32.gmra.mrb[0].mxu0 %v594
        %v661 = vpop.f32.mrb[0].mxu0
        %v662 = vadd.f32 0.0, %v661
        %v663 = vpop.f32.mrb[0].mxu0
        %664 = vdwg.mxu0
        %v666 = vrot.slane %v662, 5
        %v668 = vmul.f32 %v500, %v666
        %v669 = vadd.f32 %v668, %v589
        %v670 = vmax.f32 %v669, 0.0001
        %v672 = vrot.slane %v670, 2
        %v674 = vmul.f32 %v76, %v672
        %v676 = vrot.slane %v674, 1
        %v678 = vadd.f32 %v594, %v676
        %679 = vmatprep.subr.mxu0 0.0
        %680 = vmatpush1.msra.mxu0 %v60
        %681 = vmatprep.subr.mxu0 0.0
        %682 = vmatpush1.msra.mxu0 %v61
        %683 = vmatprep.subr.mxu0 0.0
        %684 = vmatpush1.msra.mxu0 %v62
        %685 = vmatprep.subr.mxu0 0.0
        %686 = vmatpush1.msra.mxu0 %v63
        %687 = vmatprep.subr.mxu0 0.0
        %688 = vmatpush1.msra.mxu0 %v64
        %689 = vmatprep.subr.mxu0 0.0
        %690 = vmatpush1.msra.mxu0 %v65
        %691 = vmatprep.subr.mxu0 0.0
        %692 = vmatpush1.msra.mxu0 %v66
        %693 = vmatprep.subr.mxu0 0.0
        %694 = vmatpush1.msra.mxu0 %v67
        %695 = vmatprep.subr.mxu0 0.0
        %696 = vmatpush1.msra.mxu0 %v68
        %697 = vmatprep.subr.mxu0 0.0
        %698 = vmatpush1.msra.mxu0 %v69
        %699 = vmatprep.subr.mxu0 0.0
        %700 = vmatpush1.msra.mxu0 %v70
        %701 = vmatprep.subr.mxu0 0.0
        %702 = vmatpush1.msra.mxu0 %v71
        %703 = vmatprep.subr.mxu0 0.0
        %704 = vmatpush1.msra.mxu0 %v72
        %705 = vmatprep.subr.mxu0 0.0
        %706 = vmatpush1.msra.mxu0 %v73
        %707 = vmatprep.subr.mxu0 0.0
        %708 = vmatpush1.msra.mxu0 %v74
        %709 = vmatprep.subr.mxu0 0.0
        %710 = vmatpush1.msra.mxu0 %v75
        %711 = vmatprep.subr.mxu0 0.0
        %712 = vmatpush1.msra.mxu0 0.0
        %713 = vmatprep.subr.mxu0 0.0
        %714 = vmatpush1.msra.mxu0 0.0
        %715 = vmatprep.subr.mxu0 0.0
        %716 = vmatpush1.msra.mxu0 0.0
        %717 = vmatprep.subr.mxu0 0.0
        %718 = vmatpush1.msra.mxu0 0.0
        %719 = vmatprep.subr.mxu0 0.0
        %720 = vmatpush1.msra.mxu0 0.0
        %721 = vmatprep.subr.mxu0 0.0
        %722 = vmatpush1.msra.mxu0 0.0
        %723 = vmatprep.subr.mxu0 0.0
        %724 = vmatpush1.msra.mxu0 0.0
        %725 = vmatprep.subr.mxu0 0.0
        %726 = vmatpush1.msra.mxu0 0.0
        %727 = vmatprep.subr.mxu0 0.0
        %728 = vmatpush1.msra.mxu0 0.0
        %729 = vmatprep.subr.mxu0 0.0
        %730 = vmatpush1.msra.mxu0 0.0
        %731 = vmatprep.subr.mxu0 0.0
        %732 = vmatpush1.msra.mxu0 0.0
        %733 = vmatprep.subr.mxu0 0.0
        %734 = vmatpush1.msra.mxu0 0.0
        %735 = vmatprep.subr.mxu0 0.0
        %736 = vmatpush1.msra.mxu0 0.0
        %737 = vmatprep.subr.mxu0 0.0
        %738 = vmatpush1.msra.mxu0 0.0
        %739 = vmatprep.subr.mxu0 0.0
        %740 = vmatpush1.msra.mxu0 0.0
        %741 = vmatprep.subr.mxu0 0.0
        %742 = vmatpush1.msra.mxu0 0.0
        %743 = vmatprep.mubr.f32.mxu0 0.0
        %744 = vmatmul.mubr.f32.gmra.mrb[0].mxu0 %v678
        %v745 = vpop.f32.mrb[0].mxu0
        %v746 = vadd.f32 0.0, %v745
        %v747 = vpop.f32.mrb[0].mxu0
        %748 = vdwg.mxu0
        %v750 = vrot.slane %v746, 5
        %v752 = vmul.f32 %v500, %v750
        %v753 = vadd.f32 %v752, %v589
        %v754 = vmax.f32 %v753, 0.0001
        %v756 = vrot.slane %v754, 1
        %v758 = vmul.f32 %v76, %v756
        %v760 = vrot.slane %v758, 2
        %v762 = vadd.f32 %v678, %v760
        %763 = vmatprep.subr.mxu0 0.0
        %764 = vmatpush1.msra.mxu0 %v60
        %765 = vmatprep.subr.mxu0 0.0
        %766 = vmatpush1.msra.mxu0 %v61
        %767 = vmatprep.subr.mxu0 0.0
        %768 = vmatpush1.msra.mxu0 %v62
        %769 = vmatprep.subr.mxu0 0.0
        %770 = vmatpush1.msra.mxu0 %v63
        %771 = vmatprep.subr.mxu0 0.0
        %772 = vmatpush1.msra.mxu0 %v64
        %773 = vmatprep.subr.mxu0 0.0
        %774 = vmatpush1.msra.mxu0 %v65
        %775 = vmatprep.subr.mxu0 0.0
        %776 = vmatpush1.msra.mxu0 %v66
        %777 = vmatprep.subr.mxu0 0.0
        %778 = vmatpush1.msra.mxu0 %v67
        %779 = vmatprep.subr.mxu0 0.0
        %780 = vmatpush1.msra.mxu0 %v68
        %781 = vmatprep.subr.mxu0 0.0
        %782 = vmatpush1.msra.mxu0 %v69
        %783 = vmatprep.subr.mxu0 0.0
        %784 = vmatpush1.msra.mxu0 %v70
        %785 = vmatprep.subr.mxu0 0.0
        %786 = vmatpush1.msra.mxu0 %v71
        %787 = vmatprep.subr.mxu0 0.0
        %788 = vmatpush1.msra.mxu0 %v72
        %789 = vmatprep.subr.mxu0 0.0
        %790 = vmatpush1.msra.mxu0 %v73
        %791 = vmatprep.subr.mxu0 0.0
        %792 = vmatpush1.msra.mxu0 %v74
        %793 = vmatprep.subr.mxu0 0.0
        %794 = vmatpush1.msra.mxu0 %v75
        %795 = vmatprep.subr.mxu0 0.0
        %796 = vmatpush1.msra.mxu0 0.0
        %797 = vmatprep.subr.mxu0 0.0
        %798 = vmatpush1.msra.mxu0 0.0
        %799 = vmatprep.subr.mxu0 0.0
        %800 = vmatpush1.msra.mxu0 0.0
        %801 = vmatprep.subr.mxu0 0.0
        %802 = vmatpush1.msra.mxu0 0.0
        %803 = vmatprep.subr.mxu0 0.0
        %804 = vmatpush1.msra.mxu0 0.0
        %805 = vmatprep.subr.mxu0 0.0
        %806 = vmatpush1.msra.mxu0 0.0
        %807 = vmatprep.subr.mxu0 0.0
        %808 = vmatpush1.msra.mxu0 0.0
        %809 = vmatprep.subr.mxu0 0.0
        %810 = vmatpush1.msra.mxu0 0.0
        %811 = vmatprep.subr.mxu0 0.0
        %812 = vmatpush1.msra.mxu0 0.0
        %813 = vmatprep.subr.mxu0 0.0
        %814 = vmatpush1.msra.mxu0 0.0
        %815 = vmatprep.subr.mxu0 0.0
        %816 = vmatpush1.msra.mxu0 0.0
        %817 = vmatprep.subr.mxu0 0.0
        %818 = vmatpush1.msra.mxu0 0.0
        %819 = vmatprep.subr.mxu0 0.0
        %820 = vmatpush1.msra.mxu0 0.0
        %821 = vmatprep.subr.mxu0 0.0
        %822 = vmatpush1.msra.mxu0 0.0
        %823 = vmatprep.subr.mxu0 0.0
        %824 = vmatpush1.msra.mxu0 0.0
        %825 = vmatprep.subr.mxu0 0.0
        %826 = vmatpush1.msra.mxu0 0.0
        %827 = vmatprep.mubr.f32.mxu0 0.0
        %828 = vmatmul.mubr.f32.gmra.mrb[0].mxu0 %v762
        %v829 = vpop.f32.mrb[0].mxu0
        %v830 = vadd.f32 0.0, %v829
        %v831 = vpop.f32.mrb[0].mxu0
        %832 = vdwg.mxu0
        %v834 = vrot.slane %v830, 5
        %v836 = vmul.f32 %v500, %v834
        %v837 = vadd.f32 %v836, %v589
        %v838 = vmax.f32 %v837, 0.0001
        %v839 = vmul.f32 %v76, %v838
        %v841 = vrot.slane %v839, 3
        %v843 = vadd.f32 %v762, %v841
        %s844 = scalar_lea.vmem [#allocation3], %s469
        %845 = vst [vmem:[%s844] sm:$0x1] %v843
      $region53: #{tpu_custom_call.1} parent=47 // loop_footer
        %s473 = sadd.s32 1, %s469
      $region54: #{tpu_custom_call.1} parent=47 // loop_footer_branch
        %468 = sbr.rel target = $region50
      $region55: #{tpu_custom_call.1} parent=47 // loop_exit
        _
      %846 = vst [vmem:[#allocation2] sm:$0x1] %v474
    $region48: #{tpu_custom_call.1} parent=1 // pred_fallthru
      _
    %v847 = vld [vmem:[#allocation3] sm:$0xff]
    %v848 = vld [vmem:[#allocation9] sm:$0xff]
    %v849 = vld [vmem:[#allocation9 + $0x8] sm:$0xff]
    %v850 = vld [vmem:[#allocation9 + $0x10] sm:$0xff]
    %v851 = vld [vmem:[#allocation9 + $0x18] sm:$0xff]
    %v852 = vld [vmem:[#allocation9 + $0x20] sm:$0xff]
    %v853 = vld [vmem:[#allocation9 + $0x28] sm:$0xff]
    %v854 = vld [vmem:[#allocation9 + $0x30] sm:$0xff]
    %v855 = vld [vmem:[#allocation9 + $0x38] sm:$0xff]
    %v856 = vld [vmem:[#allocation9 + $0x40] sm:$0xff]
    %v857 = vld [vmem:[#allocation9 + $0x48] sm:$0xff]
    %v858 = vld [vmem:[#allocation9 + $0x50] sm:$0xff]
    %v859 = vld [vmem:[#allocation9 + $0x58] sm:$0xff]
    %v860 = vld [vmem:[#allocation9 + $0x60] sm:$0xff]
    %v861 = vld [vmem:[#allocation9 + $0x68] sm:$0xff]
    %v862 = vld [vmem:[#allocation9 + $0x70] sm:$0xff]
    %v863 = vld [vmem:[#allocation9 + $0x78] sm:$0xff]
    %864 = vmatprep.subr.mxu0 0.0
    %865 = vmatpush1.msra.mxu0 %v848
    %866 = vmatprep.subr.mxu0 0.0
    %867 = vmatpush1.msra.mxu0 %v849
    %868 = vmatprep.subr.mxu0 0.0
    %869 = vmatpush1.msra.mxu0 %v850
    %870 = vmatprep.subr.mxu0 0.0
    %871 = vmatpush1.msra.mxu0 %v851
    %872 = vmatprep.subr.mxu0 0.0
    %873 = vmatpush1.msra.mxu0 %v852
    %874 = vmatprep.subr.mxu0 0.0
    %875 = vmatpush1.msra.mxu0 %v853
    %876 = vmatprep.subr.mxu0 0.0
    %877 = vmatpush1.msra.mxu0 %v854
    %878 = vmatprep.subr.mxu0 0.0
    %879 = vmatpush1.msra.mxu0 %v855
    %880 = vmatprep.subr.mxu0 0.0
    %881 = vmatpush1.msra.mxu0 %v856
    %882 = vmatprep.subr.mxu0 0.0
    %883 = vmatpush1.msra.mxu0 %v857
    %884 = vmatprep.subr.mxu0 0.0
    %885 = vmatpush1.msra.mxu0 %v858
    %886 = vmatprep.subr.mxu0 0.0
    %887 = vmatpush1.msra.mxu0 %v859
    %888 = vmatprep.subr.mxu0 0.0
    %889 = vmatpush1.msra.mxu0 %v860
    %890 = vmatprep.subr.mxu0 0.0
    %891 = vmatpush1.msra.mxu0 %v861
    %892 = vmatprep.subr.mxu0 0.0
    %893 = vmatpush1.msra.mxu0 %v862
    %894 = vmatprep.subr.mxu0 0.0
    %895 = vmatpush1.msra.mxu0 %v863
    %896 = vmatprep.subr.mxu0 0.0
    %897 = vmatpush1.msra.mxu0 0.0
    %898 = vmatprep.subr.mxu0 0.0
    %899 = vmatpush1.msra.mxu0 0.0
    %900 = vmatprep.subr.mxu0 0.0
    %901 = vmatpush1.msra.mxu0 0.0
    %902 = vmatprep.subr.mxu0 0.0
    %903 = vmatpush1.msra.mxu0 0.0
    %904 = vmatprep.subr.mxu0 0.0
    %905 = vmatpush1.msra.mxu0 0.0
    %906 = vmatprep.subr.mxu0 0.0
    %907 = vmatpush1.msra.mxu0 0.0
    %908 = vmatprep.subr.mxu0 0.0
    %909 = vmatpush1.msra.mxu0 0.0
    %910 = vmatprep.subr.mxu0 0.0
    %911 = vmatpush1.msra.mxu0 0.0
    %912 = vmatprep.subr.mxu0 0.0
    %913 = vmatpush1.msra.mxu0 0.0
    %914 = vmatprep.subr.mxu0 0.0
    %915 = vmatpush1.msra.mxu0 0.0
    %916 = vmatprep.subr.mxu0 0.0
    %917 = vmatpush1.msra.mxu0 0.0
    %918 = vmatprep.subr.mxu0 0.0
    %919 = vmatpush1.msra.mxu0 0.0
    %920 = vmatprep.subr.mxu0 0.0
    %921 = vmatpush1.msra.mxu0 0.0
    %922 = vmatprep.subr.mxu0 0.0
    %923 = vmatpush1.msra.mxu0 0.0
    %924 = vmatprep.subr.mxu0 0.0
    %925 = vmatpush1.msra.mxu0 0.0
    %926 = vmatprep.subr.mxu0 0.0
    %927 = vmatpush1.msra.mxu0 0.0
    %928 = vmatprep.mubr.f32.mxu0 0.0
    %929 = vmatmul.mubr.f32.gmra.mrb[0].mxu0 %v847
    %v930 = vpop.f32.mrb[0].mxu0
    %v931 = vadd.f32 0.0, %v930
    %v932 = vpop.f32.mrb[0].mxu0
    %933 = vdwg.mxu0
    %934 = vst [vmem:[#allocation10] sm:$0xff] %v931
    // Predicated region
    $region56: #{tpu_custom_call.1} parent=1 // pred_check
      _
    $region57: #{tpu_custom_call.1} parent=1 // pred_check_branch
      %936 = sbr.rel (0) target = $region59
    $region58: #{tpu_custom_call.1} parent=1 // pred_region
      %s938 = ssub.s32 128, 128
      %939 = vsyncadd [#allocation6], %s938
      %s941 = sshll.u32 [#allocation10], 4
      %s942 = int_to_ptr.vmem [resolvable:$true] %s941
      %944 = dma.vmem_to_hbm [thread:$0]  %s942, 128, %s5, [#allocation6]
    $region59: #{tpu_custom_call.1} parent=1 // pred_fallthru
      _
    // Predicated region
    $region60: #{tpu_custom_call.1} parent=1 // pred_check
      _
    $region61: #{tpu_custom_call.1} parent=1 // pred_check_branch
      %946 = sbr.rel (0) target = $region63
    $region62: #{tpu_custom_call.1} parent=1 // pred_region
      %947 = dma.done [#allocation6], 128
    $region63: #{tpu_custom_call.1} parent=1 // pred_fallthru
      _
    %948 = vsyncpa [#allocation5], 1
    %949 = vsyncpa [#allocation8], 1
    %950 = vsyncpa [#allocation6], 1

</llo_original>
